<compile_context>
chip_gen: v7x
topology: tpu7x:2x2x1
jax: 0.10.0
libtpu: 0.0.40
codegen_flags: <defaults>
</compile_context>

<pallas_src>
import jax
import jax.numpy as jnp
from jax import lax
from jax.experimental import pallas as pl
from jax.experimental.pallas import tpu as pltpu


def _round_up(x, m):
    return (x + m - 1) // m * m


def _per_core_vmem_bytes():
    """Per-TensorCore VMEM capacity with safe fallbacks."""
    try:
        return int(pltpu.get_tpu_info().vmem_capacity_bytes)
    except Exception:
        pass
    try:
        kind = jax.devices()[0].device_kind.lower()
    except Exception:
        kind = ""
    if "v7" in kind:
        return 64 * 1024 * 1024          # v7x: 64 MiB per TensorCore
    if "v2" in kind or "v3" in kind:
        return 16 * 1024 * 1024
    return 128 * 1024 * 1024             # v4 / v5e / v5p / v6e


def _num_tensorcores():
    """TensorCores a `parallel` grid axis can be sharded across (megacore)."""
    try:
        kind = jax.devices()[0].device_kind.lower()
    except Exception:
        kind = ""
    return 2 if "v7" in kind else 1      # v5e / v6e are single-TC chips


def _fusion_kernel_stacked(x_ref, y_ref, w_ref, b_ref, o_ref):
    """Single K=3D MXU dot for small D: [x | y | x*y] @ [Wx; Wy; Wp]."""
    x = x_ref[...]
    y = y_ref[...]
    feat = jnp.concatenate([x, y, x * y], axis=-1)               # (rows, 3D)
    acc = jnp.dot(feat, w_ref[...], preferred_element_type=jnp.float32)
    acc = acc + b_ref[...].astype(jnp.float32)
    o_ref[...] = jnp.tanh(acc).astype(o_ref.dtype)


def _fusion_kernel_3dot(x_ref, y_ref, wx_ref, wy_ref, wp_ref, b_ref, o_ref):
    """Three accumulating K=D dots; used when D >= 128 (MXU-depth native)."""
    x = x_ref[...]
    y = y_ref[...]
    acc = jnp.dot(x, wx_ref[...], preferred_element_type=jnp.float32)
    acc = acc + jnp.dot(y, wy_ref[...], preferred_element_type=jnp.float32)
    acc = acc + jnp.dot(x * y, wp_ref[...], preferred_element_type=jnp.float32)
    acc = acc + b_ref[...].astype(jnp.float32)
    o_ref[...] = jnp.tanh(acc).astype(o_ref.dtype)


def fusion(x, y, weight_t, bias, *, row_tile=None, col_tile=None,
           compute_dtype=None):
    """Pallas TPU Fusion: tanh(Linear(cat([x, y, x*y, x-y], -1))).

    x, y          : (B, S, D)
    weight_t      : (4*D, H)  -- transpose of the PyTorch nn.Linear weight
    bias          : (H,)
    compute_dtype : optional MXU/streaming dtype (e.g. jnp.bfloat16); the
                    accumulator, bias and tanh stay f32.
    returns       : (B, S, H)
    """
    B, S, D = x.shape
    four_d, H = weight_t.shape
    assert four_d == 4 * D, "weight_t must have shape (4*D, H)"

    out_dtype = x.dtype
    cdt = jnp.dtype(compute_dtype) if compute_dtype is not None else jnp.dtype(x.dtype)
    in_isz = cdt.itemsize
    out_isz = jnp.dtype(out_dtype).itemsize

    # ---- host-side weight rework: fold the (x - y) branch into Wx / Wy ----
    w = weight_t.astype(jnp.float32)
    w_x = w[0 * D:1 * D] + w[3 * D:4 * D]
    w_y = w[1 * D:2 * D] - w[3 * D:4 * D]
    w_p = w[2 * D:3 * D]
    b = bias.astype(jnp.float32)

    use_stacked = D < 128                 # single K=3D dot for small D

    # ---- per-generation VMEM budget (per TensorCore) ----
    vmem_cap = _per_core_vmem_bytes()
    n_tc = _num_tensorcores()
    budget = int(vmem_cap * 0.70)         # ~90 MiB v5e/v6e, ~45 MiB v7x

    # ---- column (H) tiling ----
    # Weights stay fully resident (one column step) when they fit comfortably;
    # otherwise tile H (256-aligned for v6e/v7x MXU passes).  Hp is padded up
    # to a multiple of col_tile so every output store is lane-dense/unmasked.
    Hp = _round_up(H, 128)
    w_res_bytes = 2 * (3 * D * Hp * in_isz + Hp * 4)    # double-buffered W + f32 bias
    if col_tile is None:
        col_tile = Hp if w_res_bytes <= max(budget // 4, 8 * 1024 * 1024) else 512
    col_tile = max(128, min(col_tile, Hp) // 128 * 128)
    if col_tile >= 256:
        col_tile = col_tile // 256 * 256                # whole 256-wide MXU passes
    Hp = _round_up(Hp, col_tile)
    Cn = Hp // col_tile

    if Hp != H:
        pad = ((0, 0), (0, Hp - H))
        w_x = jnp.pad(w_x, pad)
        w_y = jnp.pad(w_y, pad)
        w_p = jnp.pad(w_p, pad)
        b = jnp.pad(b, (0, Hp - H))
    b2 = b.reshape(1, Hp)                               # f32 bias row

    if use_stacked:
        w_all = jnp.concatenate([w_x, w_y, w_p], axis=0).astype(cdt)   # (3D, Hp)
    else:
        w_x = w_x.astype(cdt)
        w_y = w_y.astype(cdt)
        w_p = w_p.astype(cdt)

    # ---- row tiling (sized against the per-generation budget) ----
    rows = B * S
    # Fixed (row-independent) VMEM: double-buffered weight tile(s) + f32 bias.
    fixed = 2 * (3 * D * col_tile * in_isz) + 2 * col_tile * 4
    # Per-row VMEM: double-buffered x,y, double-buffered output tile, the live
    # f32 accumulator, and (stacked path) the in-kernel [x|y|x*y] operand.
    per_row = (2 * 2 * D * in_isz            # x, y tiles (double-buffered)
               + 2 * col_tile * out_isz      # output tile (double-buffered)
               + col_tile * 4)               # f32 accumulator
    if use_stacked:
        per_row += 3 * D * in_isz
    vmem_rows = max(8, ((budget - fixed) // max(per_row, 1)) // 8 * 8)

    user_rt = row_tile is not None
    if row_tile is None:
        row_tile = 1024                      # mem-bound sweet spot (~85%+ of HBM roofline)
    row_tile = max(8, min(row_tile // 8 * 8, vmem_rows))
    rows8 = _round_up(rows, 8)
    row_tile = min(row_tile, rows8)

    # Megacore: only dual-TC chips (v7x) benefit from splitting the row axis,
    # and only when each TensorCore still gets a roofline-sized (>=512 row)
    # tile; the step count is rounded to a multiple of the TC count so both
    # cores get equal work.  Single-TC v5e/v6e keep the coarsest grid.
    if (not user_rt) and n_tc > 1 and rows8 >= n_tc * 512:
        steps = -(-rows8 // row_tile)
        if steps % n_tc:
            steps = _round_up(steps, n_tc)
            row_tile = max(8, _round_up(-(-rows8 // steps), 8))

    rows_p = _round_up(rows, row_tile)
    Rn = rows_p // row_tile

    x2 = x.reshape(rows, D).astype(cdt)
    y2 = y.reshape(rows, D).astype(cdt)
    if rows_p != rows:
        x2 = jnp.pad(x2, ((0, rows_p - rows), (0, 0)))
        y2 = jnp.pad(y2, ((0, rows_p - rows), (0, 0)))

    # Explicit scoped-VMEM limit (instead of relying on the 16/32 MiB default),
    # clamped to the per-TC physical capacity.
    vmem_limit = int(min(vmem_cap,
                         max(32 * 1024 * 1024, 2 * (fixed + per_row * row_tile))))

    # Grid: column axis OUTER (slowest), row axis inner (fastest).  The weight
    # and bias block indices depend only on the outer index, so they are DMA'd
    # once per column step and reused across every row step.
    grid = (Cn, Rn)

    if use_stacked:
        kernel = _fusion_kernel_stacked
        w_specs = [pl.BlockSpec((3 * D, col_tile), lambda j, i: (0, j))]
        w_args = (w_all,)
    else:
        kernel = _fusion_kernel_3dot
        w_specs = [pl.BlockSpec((D, col_tile), lambda j, i: (0, j)),
                   pl.BlockSpec((D, col_tile), lambda j, i: (0, j)),
                   pl.BlockSpec((D, col_tile), lambda j, i: (0, j))]
        w_args = (w_x, w_y, w_p)

    out2 = pl.pallas_call(
        kernel,
        out_shape=jax.ShapeDtypeStruct((rows_p, Hp), out_dtype),
        grid_spec=pltpu.PrefetchScalarGridSpec(
            num_scalar_prefetch=0,
            grid=grid,
            in_specs=[
                pl.BlockSpec((row_tile, D), lambda j, i: (i, 0)),   # x rows
                pl.BlockSpec((row_tile, D), lambda j, i: (i, 0)),   # y rows
                *w_specs,                                           # weights
                pl.BlockSpec((1, col_tile), lambda j, i: (0, j)),   # f32 bias
            ],
            out_specs=pl.BlockSpec((row_tile, col_tile), lambda j, i: (i, j)),
        ),
        compiler_params=pltpu.CompilerParams(
            dimension_semantics=("parallel", "parallel"),
            vmem_limit_bytes=vmem_limit),
    )(x2, y2, *w_args, b2)

    return out2[:rows, :H].reshape(B, S, H)


def reference_fusion(x, y, weight_t, bias):
    feat = jnp.concatenate([x, y, x * y, x - y], axis=2)
    logits = lax.dot_general(
        feat, weight_t, (((2,), (0,)), ((), ())),
        precision=lax.Precision.HIGHEST)
    return jnp.tanh(logits + bias)


def _make_params(key, D, H):
    """Deterministic nn.Linear-style init; returns (weight_t, bias)."""
    k_w, k_b = jax.random.split(key)
    fan_in = 4 * D
    bound = 1.0 / (fan_in ** 0.5)
    # PyTorch weight is (H, 4*D); the kernel wrapper takes its transpose.
    weight = jax.random.uniform(k_w, (H, fan_in), minval=-bound, maxval=bound,
                                dtype=jnp.float32)
    bias = jax.random.uniform(k_b, (H,), minval=-bound, maxval=bound,
                              dtype=jnp.float32)
    return weight.T, bias


if __name__ == "__main__":
    key = jax.random.PRNGKey(0)

    # ---- small-D case (stacked single K=3D dot path) ----
    B, S, D, H = 2, 8, 32, 32  # batch, seq, input_dim, hidden_dim
    k_x, k_y, k_p = jax.random.split(key, 3)
    x = jax.random.normal(k_x, (B, S, D), dtype=jnp.float32)
    y = jax.random.normal(k_y, (B, S, D), dtype=jnp.float32)
    weight_t, bias = _make_params(k_p, D, H)

    ref = reference_fusion(x, y, weight_t, bias)

    out = jax.block_until_ready(fusion(x, y, weight_t, bias))
    assert out.shape == (B, S, H)
    # Folding the (x-y) branch into Wx/Wy reassociates the sums relative to the
    # single 4D-wide reference matmul; allow matmul-precision-level deltas.
    max_err = float(jnp.max(jnp.abs(out - ref)))
    assert jnp.allclose(out, ref, atol=1e-2, rtol=1e-2), max_err

    # bf16-streamed variant: halves x/y/W HBM traffic, keeps f32 accumulation.
    out_bf = jax.block_until_ready(
        fusion(x, y, weight_t, bias, compute_dtype=jnp.bfloat16))
    max_err_bf = float(jnp.max(jnp.abs(out_bf.astype(jnp.float32) - ref)))
    assert jnp.allclose(out_bf.astype(jnp.float32), ref,
                        atol=5e-2, rtol=5e-2), max_err_bf

    # ---- larger-D case (3-dot path, non-multiple-of-128 H padding) ----
    D2, H2 = 128, 192
    k_x2, k_y2, k_p2 = jax.random.split(jax.random.PRNGKey(1), 3)
    x2 = jax.random.normal(k_x2, (B, S, D2), dtype=jnp.float32)
    y2 = jax.random.normal(k_y2, (B, S, D2), dtype=jnp.float32)
    weight_t2, bias2 = _make_params(k_p2, D2, H2)
    ref2 = reference_fusion(x2, y2, weight_t2, bias2)
    out2 = jax.block_until_ready(fusion(x2, y2, weight_t2, bias2))
    assert out2.shape == (B, S, H2)
    max_err2 = float(jnp.max(jnp.abs(out2 - ref2)))
    assert jnp.allclose(out2, ref2, atol=1e-2, rtol=1e-2), max_err2

    print("KERNEL_OK")
</pallas_src>

<mosaic_0001>
module attributes {stable_mosaic.version = 11 : i64} {
  func.func @_fusion_kernel_stacked(%arg0: i32, %arg1: i32, %arg2: memref<16x32xf32, #tpu.memory_space<vmem>>, %arg3: memref<16x32xf32, #tpu.memory_space<vmem>>, %arg4: memref<96x128xf32, #tpu.memory_space<vmem>>, %arg5: memref<1x128xf32, #tpu.memory_space<vmem>>, %arg6: memref<16x128xf32, #tpu.memory_space<vmem>>) attributes {dimension_semantics = [#tpu.dimension_semantics<parallel>, #tpu.dimension_semantics<parallel>], iteration_bounds = array<i64: 1, 1>, scalar_prefetch = 0 : i64, scratch_operands = 0 : i64, tpu.core_type = #tpu.core_type<tc>, window_params = [{transform_indices = @transform_0, window_bounds = array<i64: 16, 32>}, {transform_indices = @transform_1, window_bounds = array<i64: 16, 32>}, {transform_indices = @transform_2, window_bounds = array<i64: 96, 128>}, {transform_indices = @transform_3, window_bounds = array<i64: 1, 128>}, {transform_indices = @transform_4, window_bounds = array<i64: 16, 128>}]} {
    %c0 = arith.constant 0 : index
    %c0_0 = arith.constant 0 : index
    %0 = vector.load %arg2[%c0, %c0_0] : memref<16x32xf32, #tpu.memory_space<vmem>>, vector<16x32xf32>
    %c0_1 = arith.constant 0 : index
    %c0_2 = arith.constant 0 : index
    %1 = vector.load %arg3[%c0_1, %c0_2] : memref<16x32xf32, #tpu.memory_space<vmem>>, vector<16x32xf32>
    %2 = arith.mulf %0, %1 : vector<16x32xf32>
    %3 = tpu.concatenate %0, %1, %2 in 1 : vector<16x32xf32>, vector<16x32xf32>, vector<16x32xf32> -> vector<16x96xf32>
    %c0_3 = arith.constant 0 : index
    %c0_4 = arith.constant 0 : index
    %4 = vector.load %arg4[%c0_3, %c0_4] : memref<96x128xf32, #tpu.memory_space<vmem>>, vector<96x128xf32>
    %cst = arith.constant dense<0.000000e+00> : vector<16x128xf32>
    %5 = tpu.matmul %3, %4, %cst {dimension_numbers = #tpu.dot_dimension_numbers<[1], [0], [0], [1], [0, 0, 1, 1], [], []>} : vector<16x96xf32>, vector<96x128xf32>, vector<16x128xf32> -> vector<16x128xf32>
    %c0_5 = arith.constant 0 : index
    %c0_6 = arith.constant 0 : index
    %6 = vector.load %arg5[%c0_5, %c0_6] : memref<1x128xf32, #tpu.memory_space<vmem>>, vector<1x128xf32>
    %7 = vector.broadcast %6 : vector<1x128xf32> to vector<16x128xf32>
    %8 = arith.addf %5, %7 : vector<16x128xf32>
    %9 = math.tanh %8 : vector<16x128xf32>
    %c0_7 = arith.constant 0 : index
    %c0_8 = arith.constant 0 : index
    %10 = vector.load %arg6[%c0_7, %c0_8] : memref<16x128xf32, #tpu.memory_space<vmem>>, vector<16x128xf32>
    tpu.vector_store %arg6[%c0_7, %c0_8], %9 {strides = array<i32>} : memref<16x128xf32, #tpu.memory_space<vmem>>, vector<16x128xf32>,
    return
  }
  func.func @transform_0(%arg0: i32, %arg1: i32) -> (i32, i32) {
    %c0_i32 = arith.constant 0 : i32
    %c0_i32_0 = arith.constant 0 : i32
    return %arg1, %c0_i32 : i32, i32
  }
  func.func @transform_1(%arg0: i32, %arg1: i32) -> (i32, i32) {
    %c0_i32 = arith.constant 0 : i32
    %c0_i32_0 = arith.constant 0 : i32
    return %arg1, %c0_i32 : i32, i32
  }
  func.func @transform_2(%arg0: i32, %arg1: i32) -> (i32, i32) {
    %c0_i32 = arith.constant 0 : i32
    %c0_i32_0 = arith.constant 0 : i32
    return %c0_i32, %arg0 : i32, i32
  }
  func.func @transform_3(%arg0: i32, %arg1: i32) -> (i32, i32) {
    %c0_i32 = arith.constant 0 : i32
    %c0_i32_0 = arith.constant 0 : i32
    return %c0_i32, %arg0 : i32, i32
  }
  func.func @transform_4(%arg0: i32, %arg1: i32) -> (i32, i32) {
    %c0_i32 = arith.constant 0 : i32
    return %arg1, %arg0 : i32, i32
  }
}

</mosaic_0001>

<llo_original>
// kernel: tpu_custom_call.1
$region0: #{tpu_custom_call.1}
  #allocation0 [shape = 'u32[]', space=smem, size = 0x4, offset = 0x4, fixed_abs, tag = 'smem constant byte address 0x4 - core index']
  #allocation1 [shape = 'u32[144,128]{1,0:T(1,128)}', space=vmem, size = 0x12000, scoped, tag = 'internal scratch']
  %s0 = inlined_call_operand.hbm [shape: f32[16,32], index: 0, kind: input, shape index: {}]
  %s1 = inlined_call_operand.hbm [shape: f32[16,32], index: 1, kind: input, shape index: {}]
  %s2 = inlined_call_operand.hbm [shape: f32[96,128], index: 2, kind: input, shape index: {}]
  %s3 = inlined_call_operand.vmem [shape: f32[1,128], index: 3, kind: input, shape index: {}]
  %s4 = inlined_call_operand.hbm [shape: f32[16,128], index: 4, kind: output, shape index: {}]
  %s5 = sld [smem:[#allocation0]]
  $region38: #{tpu_custom_call.1} parent=0
    _
  %s7 = ssub.s32 1, %s5
  %s8 = scalar_select 0, %s7, %s5
  $region1: #{tpu_custom_call.1} parent=0
    #allocation2 [shape = 'u8[8192]{0}', space=vmem, size = 0x2000, scoped, tag = 'input window, operand 0, single buffered']
    #allocation3 [shape = 's32[1]{0}', space=sflag, size = 0x4, scoped, tag = 'scoped memory for tpu_custom_call.1']
    #allocation4 [shape = 's32[1]{0}', space=sflag, size = 0x4, scoped, tag = 'scoped memory for tpu_custom_call.1']
    #allocation5 [shape = 'u8[8192]{0}', space=vmem, size = 0x2000, scoped, tag = 'input window, operand 1, single buffered']
    #allocation6 [shape = 's32[1]{0}', space=sflag, size = 0x4, scoped, tag = 'scoped memory for tpu_custom_call.1']
    #allocation7 [shape = 'u8[49152]{0}', space=vmem, size = 0xc000, scoped, tag = 'input window, operand 2, single buffered']
    #allocation8 [shape = 'u8[8192]{0}', space=vmem, size = 0x2000, scoped, tag = 'output window, operand 0, single buffered']
    %9 = vsyncpa [#allocation3], 0
    %10 = vsyncpa [#allocation6], 0
    %11 = vsyncpa [#allocation4], 0
    // Predicated region
    $region2: #{tpu_custom_call.1} parent=1 // pred_check
      _
    $region3: #{tpu_custom_call.1} parent=1 // pred_check_branch
      %13 = sbr.rel (0) target = $region5
    $region4: #{tpu_custom_call.1} parent=1 // pred_region
      %s15 = ssub.s32 256, 256
      %16 = vsyncadd [#allocation3], %s15
      %s17 = sshll.u32 [#allocation2], 4
      %s18 = int_to_ptr.vmem [resolvable:$true] %s17
      %23 = dma.hbm_to_vmem [thread:$0]  %s0, 256, %s18, [#allocation3], 128, 128, 8
    $region5: #{tpu_custom_call.1} parent=1 // pred_fallthru
      _
    // Predicated region
    $region6: #{tpu_custom_call.1} parent=1 // pred_check
      _
    $region7: #{tpu_custom_call.1} parent=1 // pred_check_branch
      %25 = sbr.rel (0) target = $region9
    $region8: #{tpu_custom_call.1} parent=1 // pred_region
      %s27 = ssub.s32 256, 256
      %28 = vsyncadd [#allocation6], %s27
      %s29 = sshll.u32 [#allocation5], 4
      %s30 = int_to_ptr.vmem [resolvable:$true] %s29
      %35 = dma.hbm_to_vmem [thread:$0]  %s1, 256, %s30, [#allocation6], 128, 128, 8
    $region9: #{tpu_custom_call.1} parent=1 // pred_fallthru
      _
    // Predicated region
    $region10: #{tpu_custom_call.1} parent=1 // pred_check
      _
    $region11: #{tpu_custom_call.1} parent=1 // pred_check_branch
      %37 = sbr.rel (0) target = $region13
    $region12: #{tpu_custom_call.1} parent=1 // pred_region
      %s39 = ssub.s32 1536, 1536
      %40 = vsyncadd [#allocation6], %s39
      %s41 = sshll.u32 [#allocation7], 4
      %s42 = int_to_ptr.vmem [resolvable:$true] %s41
      %47 = dma.hbm_to_vmem [thread:$0]  %s2, 1536, %s42, [#allocation6], 128, 128, 8
    $region13: #{tpu_custom_call.1} parent=1 // pred_fallthru
      _
    // Predicated region
    $region14: #{tpu_custom_call.1} parent=1 // pred_check
      _
    $region15: #{tpu_custom_call.1} parent=1 // pred_check_branch
      %49 = sbr.rel (0) target = $region17
    $region16: #{tpu_custom_call.1} parent=1 // pred_region
      _
    $region17: #{tpu_custom_call.1} parent=1 // pred_fallthru
      _
    // Predicated region
    $region18: #{tpu_custom_call.1} parent=1 // pred_check
      _
    $region19: #{tpu_custom_call.1} parent=1 // pred_check_branch
      %51 = sbr.rel (0) target = $region21
    $region20: #{tpu_custom_call.1} parent=1 // pred_region
      %52 = dma.done [#allocation3], 256
    $region21: #{tpu_custom_call.1} parent=1 // pred_fallthru
      _
    // Predicated region
    $region22: #{tpu_custom_call.1} parent=1 // pred_check
      _
    $region23: #{tpu_custom_call.1} parent=1 // pred_check_branch
      %54 = sbr.rel (0) target = $region25
    $region24: #{tpu_custom_call.1} parent=1 // pred_region
      %55 = dma.done [#allocation6], 256
    $region25: #{tpu_custom_call.1} parent=1 // pred_fallthru
      _
    // Predicated region
    $region26: #{tpu_custom_call.1} parent=1 // pred_check
      _
    $region27: #{tpu_custom_call.1} parent=1 // pred_check_branch
      %57 = sbr.rel (0) target = $region29
    $region28: #{tpu_custom_call.1} parent=1 // pred_region
      %58 = dma.done [#allocation6], 1536
    $region29: #{tpu_custom_call.1} parent=1 // pred_fallthru
      _
    %v59 = vld [vmem:[#allocation2] sm:$0xff]
    %v60 = vld [vmem:[#allocation2 + $0x8] sm:$0xff]
    %v61 = vld [vmem:[#allocation5] sm:$0xff]
    %v62 = vld [vmem:[#allocation5 + $0x8] sm:$0xff]
    %v63 = vmul.f32 %v59, %v61
    %v64 = vmul.f32 %v60, %v62
    %67 = vrot.lane.b32.xlu0 %v61, 32
    %v68 = vpop.permute.xlu0 %67
    %69 = vrot.lane.b32.xlu0 %v62, 32
    %v70 = vpop.permute.xlu0 %69
    %75 = vrot.lane.b32.xlu0 %v63, 64
    %v76 = vpop.permute.xlu0 %75
    %77 = vrot.lane.b32.xlu0 %v64, 64
    %v78 = vpop.permute.xlu0 %77
    %vm81 = vcmask 261120
    %v82 = vsel %vm81, %v59, %v68
    %v83 = vsel %vm81, %v60, %v70
    %vm84 = vcmask 523264
    %v85 = vsel %vm84, %v82, %v76
    %v86 = vsel %vm84, %v83, %v78
    %v87 = vld [vmem:[#allocation7] sm:$0xff]
    %v88 = vld [vmem:[#allocation7 + $0x8] sm:$0xff]
    %v89 = vld [vmem:[#allocation7 + $0x10] sm:$0xff]
    %v90 = vld [vmem:[#allocation7 + $0x18] sm:$0xff]
    %v91 = vld [vmem:[#allocation7 + $0x20] sm:$0xff]
    %v92 = vld [vmem:[#allocation7 + $0x28] sm:$0xff]
    %v93 = vld [vmem:[#allocation7 + $0x30] sm:$0xff]
    %v94 = vld [vmem:[#allocation7 + $0x38] sm:$0xff]
    %v95 = vld [vmem:[#allocation7 + $0x40] sm:$0xff]
    %v96 = vld [vmem:[#allocation7 + $0x48] sm:$0xff]
    %v97 = vld [vmem:[#allocation7 + $0x50] sm:$0xff]
    %v98 = vld [vmem:[#allocation7 + $0x58] sm:$0xff]
    %v99 = vld [vmem:[%s3] sm:$0x1]
    %v101 = vlaneseq
    %v102 = vshrl.u32 %v101, 7
    %v103 = vsub.s32 0, %v102
    %v104 = vrot.slane %v99, %v103
    %vm106 = vcmask 785408
    %v108 = vsel %vm106, %v85, 0
    %v111 = vsel %vm106, %v86, 0
    %113 = vmatprep.subr.mxu0 0.0
    %114 = vmatpush1.msra.mxu0 %v87
    %115 = vmatprep.subr.mxu0 0.0
    %116 = vmatpush1.msra.mxu0 %v88
    %117 = vmatprep.subr.mxu0 0.0
    %118 = vmatpush1.msra.mxu0 %v89
    %119 = vmatprep.subr.mxu0 0.0
    %120 = vmatpush1.msra.mxu0 %v90
    %121 = vmatprep.subr.mxu0 0.0
    %122 = vmatpush1.msra.mxu0 %v91
    %123 = vmatprep.subr.mxu0 0.0
    %124 = vmatpush1.msra.mxu0 %v92
    %125 = vmatprep.subr.mxu0 0.0
    %126 = vmatpush1.msra.mxu0 %v93
    %127 = vmatprep.subr.mxu0 0.0
    %128 = vmatpush1.msra.mxu0 %v94
    %129 = vmatprep.subr.mxu0 0.0
    %130 = vmatpush1.msra.mxu0 %v95
    %131 = vmatprep.subr.mxu0 0.0
    %132 = vmatpush1.msra.mxu0 %v96
    %133 = vmatprep.subr.mxu0 0.0
    %134 = vmatpush1.msra.mxu0 %v97
    %135 = vmatprep.subr.mxu0 0.0
    %136 = vmatpush1.msra.mxu0 %v98
    %137 = vmatprep.subr.mxu0 0.0
    %138 = vmatpush1.msra.mxu0 0.0
    %139 = vmatprep.subr.mxu0 0.0
    %140 = vmatpush1.msra.mxu0 0.0
    %141 = vmatprep.subr.mxu0 0.0
    %142 = vmatpush1.msra.mxu0 0.0
    %143 = vmatprep.subr.mxu0 0.0
    %144 = vmatpush1.msra.mxu0 0.0
    %145 = vmatprep.subr.mxu0 0.0
    %146 = vmatpush1.msra.mxu0 0.0
    %147 = vmatprep.subr.mxu0 0.0
    %148 = vmatpush1.msra.mxu0 0.0
    %149 = vmatprep.subr.mxu0 0.0
    %150 = vmatpush1.msra.mxu0 0.0
    %151 = vmatprep.subr.mxu0 0.0
    %152 = vmatpush1.msra.mxu0 0.0
    %153 = vmatprep.subr.mxu0 0.0
    %154 = vmatpush1.msra.mxu0 0.0
    %155 = vmatprep.subr.mxu0 0.0
    %156 = vmatpush1.msra.mxu0 0.0
    %157 = vmatprep.subr.mxu0 0.0
    %158 = vmatpush1.msra.mxu0 0.0
    %159 = vmatprep.subr.mxu0 0.0
    %160 = vmatpush1.msra.mxu0 0.0
    %161 = vmatprep.subr.mxu0 0.0
    %162 = vmatpush1.msra.mxu0 0.0
    %163 = vmatprep.subr.mxu0 0.0
    %164 = vmatpush1.msra.mxu0 0.0
    %165 = vmatprep.subr.mxu0 0.0
    %166 = vmatpush1.msra.mxu0 0.0
    %167 = vmatprep.subr.mxu0 0.0
    %168 = vmatpush1.msra.mxu0 0.0
    %169 = vmatprep.subr.mxu0 0.0
    %170 = vmatpush1.msra.mxu0 0.0
    %171 = vmatprep.subr.mxu0 0.0
    %172 = vmatpush1.msra.mxu0 0.0
    %173 = vmatprep.subr.mxu0 0.0
    %174 = vmatpush1.msra.mxu0 0.0
    %175 = vmatprep.subr.mxu0 0.0
    %176 = vmatpush1.msra.mxu0 0.0
    %177 = vmatprep.mubr.f32.mxu0 0.0
    %178 = vmatmul.mubr.f32.gmra.mrb[0].mxu0 %v108
    %v179 = vpop.f32.mrb[0].mxu0
    %v180 = vadd.f32 %v104, %v179
    %v181 = vpop.f32.mrb[0].mxu0
    %182 = vmatprep.mubr.f32.mxu0 0.0
    %183 = vmatmul.mubr.f32.gmra.mrb[0].mxu0 %v111
    %v184 = vpop.f32.mrb[0].mxu0
    %v185 = vadd.f32 %v104, %v184
    %v186 = vpop.f32.mrb[0].mxu0
    %187 = vdwg.mxu0
    %v188 = vtanh.pop %v180
    %v189 = vtanh.pop %v185
    %190 = vst [vmem:[#allocation8] sm:$0xff] %v188
    %191 = vst [vmem:[#allocation8 + $0x8] sm:$0xff] %v189
    // Predicated region
    $region30: #{tpu_custom_call.1} parent=1 // pred_check
      _
    $region31: #{tpu_custom_call.1} parent=1 // pred_check_branch
      %193 = sbr.rel (0) target = $region33
    $region32: #{tpu_custom_call.1} parent=1 // pred_region
      %s195 = ssub.s32 256, 256
      %196 = vsyncadd [#allocation4], %s195
      %s197 = sshll.u32 [#allocation8], 4
      %s198 = int_to_ptr.vmem [resolvable:$true] %s197
      %203 = dma.vmem_to_hbm [thread:$0]  %s198, 256, %s4, [#allocation4], 128, 128, 8
    $region33: #{tpu_custom_call.1} parent=1 // pred_fallthru
      _
    // Predicated region
    $region34: #{tpu_custom_call.1} parent=1 // pred_check
      _
    $region35: #{tpu_custom_call.1} parent=1 // pred_check_branch
      %205 = sbr.rel (0) target = $region37
    $region36: #{tpu_custom_call.1} parent=1 // pred_region
      %206 = dma.done [#allocation4], 256
    $region37: #{tpu_custom_call.1} parent=1 // pred_fallthru
      _
    %207 = vsyncpa [#allocation3], 1
    %208 = vsyncpa [#allocation6], 1
    %209 = vsyncpa [#allocation4], 1

</llo_original>
